<compile_context>
chip_gen: v5e
topology: v5e:2x2
jax: 0.10.0
libtpu: 0.0.40
codegen_flags: <defaults>
</compile_context>

<pallas_src>
import functools

import jax
import jax.numpy as jnp
from jax import lax
from jax.experimental import pallas as pl
from jax.experimental.pallas import tpu as pltpu

LANE = 128
CHUNK_ROWS = 512               # rows per fori_loop iteration (256 KiB f32 temps)
MAX_BLOCK_ROWS = 8192          # 4 MiB f32 per input per pipeline buffer
VMEM_LIMIT_BYTES = 32 * 1024 * 1024


def _round_up(x, m):
    return (x + m - 1) // m * m


def _focal_loss_kernel(x_ref, t_ref, partial_ref, *, alpha, gamma,
                       block_rows, chunk_rows, n_valid, needs_mask):
    """One grid step: reduce a (block_rows, 128) tile to an (8, 128) partial sum."""
    nchunks = block_rows // chunk_rows
    base_row = pl.program_id(0) * block_rows

    def chunk_sum(c, acc):
        r0 = pl.multiple_of(c * chunk_rows, chunk_rows)
        x = x_ref[pl.ds(r0, chunk_rows), :].astype(jnp.float32)
        t = t_ref[pl.ds(r0, chunk_rows), :].astype(jnp.float32)

        # Stable BCE-with-logits: bce = max(x,0) - x*t + log1p(exp(-|x|)).
        s = jnp.exp(-jnp.abs(x))
        bce = jnp.maximum(x, 0.0) - x * t + jnp.log1p(s)

        # at = [alpha, 1-alpha].gather(targets) = alpha + t*(1-2*alpha), t in {0,1}.
        at = alpha + t * (1.0 - 2.0 * alpha)

        # u = 1 - exp(-bce), computed algebraically from s (no extra dependent
        # exp on the EUP):  pt = [t == (x>0) ? 1 : s] / (1+s)
        #              =>    u = [t == (x>0) ? s : 1] / (1+s)
        num = jnp.where((x > 0.0) == (t > 0.5), s, 1.0)
        # TODO(synk): flip approx=True (EUP vrcp) on v7x if the caller can
        # tolerate the approximate-reciprocal error; kept exact here so the
        # self-test holds at rtol=1e-5.
        u = num * pl.reciprocal(1.0 + s, approx=False)

        g = float(gamma)
        if g == int(g) and int(g) >= 0:
            modulator = lax.integer_pow(u, int(g))   # gamma=2 -> u*u (VPU only)
        else:
            modulator = u ** g                        # general float exponent
        f = at * modulator * bce                      # (chunk_rows, 128)

        if needs_mask:
            # Zero out the tail-padding elements (global flat index >= n).
            row = lax.broadcasted_iota(jnp.int32, (chunk_rows, LANE), 0)
            col = lax.broadcasted_iota(jnp.int32, (chunk_rows, LANE), 1)
            gidx = (base_row + r0 + row) * LANE + col
            f = jnp.where(gidx < n_valid, f, 0.0)

        # Fold the chunk into one vreg of partial sums: group rows into vregs
        # (no (8,128) tile-boundary crossing) and add them on the VPU.
        return acc + jnp.sum(f.reshape(-1, 8, LANE), axis=0)

    acc = lax.fori_loop(0, nchunks, chunk_sum,
                        jnp.zeros((8, LANE), jnp.float32),
                        unroll=min(nchunks, 4))
    partial_ref[...] = acc[None, :, :]


def _plan_blocks(rows, row_align):
    """Pick (block_rows, num_blocks, chunk_rows) for a `rows`-row lane-dense slab."""
    r_aligned = _round_up(max(rows, 1), row_align)
    if r_aligned <= CHUNK_ROWS:
        return r_aligned, 1, r_aligned
    if r_aligned <= 2 * MAX_BLOCK_ROWS:
        # Aim for exactly 2 blocks so both v7x TensorCores get work.
        block_rows = _round_up(-(-r_aligned // 2), CHUNK_ROWS)
    else:
        block_rows = MAX_BLOCK_ROWS
    num_blocks = -(-r_aligned // block_rows)
    return block_rows, num_blocks, CHUNK_ROWS


def weighted_focal_loss(inputs, targets, alpha=0.25, gamma=2):
    """Pallas TPU implementation of WeightedFocalLoss.forward.

    inputs:  float logits, any shape (e.g. NCHW).
    targets: same shape, values in {0, 1}; any int/bool/float dtype (read in
             its native dtype; cast to f32 happens in-kernel).
    returns: scalar float32 mean focal loss.
    """
    x = inputs.reshape(-1)           # native dtype, no wrapper-side cast
    t = targets.reshape(-1)          # native dtype, no wrapper-side cast
    n = x.shape[0]

    rows = -(-n // LANE)
    # Row alignment satisfying the sublane tiling of the narrowest input dtype
    # (8 rows for 4-byte, 16 for 2-byte, 32 for 1-byte/bool).
    min_bytes = min(int(jnp.dtype(inputs.dtype).itemsize),
                    int(jnp.dtype(targets.dtype).itemsize))
    row_align = 8 * max(1, 4 // min_bytes)
    block_rows, num_blocks, chunk_rows = _plan_blocks(rows, row_align)

    padded_rows = num_blocks * block_rows
    padded_n = padded_rows * LANE
    needs_mask = padded_n != n
    if needs_mask:
        x = jnp.pad(x, (0, padded_n - n))
        t = jnp.pad(t, (0, padded_n - n))

    x2d = x.reshape(padded_rows, LANE)
    t2d = t.reshape(padded_rows, LANE)

    kernel = functools.partial(
        _focal_loss_kernel, alpha=float(alpha), gamma=gamma,
        block_rows=block_rows, chunk_rows=chunk_rows,
        n_valid=n, needs_mask=needs_mask)

    partials = pl.pallas_call(
        kernel,
        out_shape=jax.ShapeDtypeStruct((num_blocks, 8, LANE), jnp.float32),
        grid_spec=pltpu.PrefetchScalarGridSpec(
            num_scalar_prefetch=0,
            grid=(num_blocks,),
            in_specs=[
                pl.BlockSpec((block_rows, LANE), lambda i: (i, 0)),
                pl.BlockSpec((block_rows, LANE), lambda i: (i, 0)),
            ],
            out_specs=pl.BlockSpec((1, 8, LANE), lambda i: (i, 0, 0)),
        ),
        compiler_params=pltpu.CompilerParams(
            dimension_semantics=("parallel",),
            vmem_limit_bytes=VMEM_LIMIT_BYTES),
    )(x2d, t2d)

    # Single cross-lane reduce + mean in the wrapper (tiny); divide by true n.
    return (jnp.sum(partials) / jnp.float32(n)).astype(jnp.float32)


def _reference_focal_loss(inputs, targets, alpha=0.25, gamma=2):
    x = inputs.reshape(-1).astype(jnp.float32)
    t = targets.reshape(-1).astype(jnp.float32)
    bce = jnp.maximum(x, 0.0) - x * t + jnp.log1p(jnp.exp(-jnp.abs(x)))
    at = jnp.where(t > 0.5, 1.0 - alpha, alpha)
    pt = jnp.exp(-bce)
    return jnp.mean(at * (1.0 - pt) ** gamma * bce)


if __name__ == "__main__":
    key = jax.random.PRNGKey(0)

    # Module parameters (deterministic, from __init__): alpha=0.25, gamma=2.
    alpha, gamma = 0.25, 2

    # Case 1: NCHW logits / binary targets, (2, 4, 16, 16) — no padding path.
    # Case 2: odd shape (2, 3, 15, 17) — exercises pad + in-kernel masking.
    for shape in [(2, 4, 16, 16), (2, 3, 15, 17)]:
        key, k_x, k_t = jax.random.split(key, 3)
        inputs = jax.random.normal(k_x, shape, dtype=jnp.float32)
        targets = jax.random.bernoulli(k_t, p=0.3, shape=shape).astype(jnp.int32)

        out = weighted_focal_loss(inputs, targets, alpha=alpha, gamma=gamma)
        out = jax.block_until_ready(out)

        ref = _reference_focal_loss(inputs, targets, alpha=alpha, gamma=gamma)
        assert jnp.allclose(out, ref, rtol=1e-5, atol=1e-6), (shape, out, ref)

    print("KERNEL_OK")
</pallas_src>

<mosaic_0001>
module attributes {stable_mosaic.version = 11 : i64} {
  func.func @_focal_loss_kernel(%arg0: i32, %arg1: memref<16x128xf32, #tpu.memory_space<vmem>>, %arg2: memref<16x128xi32, #tpu.memory_space<vmem>>, %arg3: memref<1x8x128xf32, #tpu.memory_space<vmem>>) attributes {dimension_semantics = [#tpu.dimension_semantics<parallel>], iteration_bounds = array<i64: 1>, scalar_prefetch = 0 : i64, scratch_operands = 0 : i64, tpu.core_type = #tpu.core_type<tc>, window_params = [{transform_indices = @transform_0, window_bounds = array<i64: 16, 128>}, {transform_indices = @transform_1, window_bounds = array<i64: 16, 128>}, {transform_indices = @transform_2, window_bounds = array<i64: 1, 8, 128>}]} {
    %cst = arith.constant 0.000000e+00 : f32
    %0 = vector.broadcast %cst : f32 to vector<8x128xf32>
    %c0_i32 = arith.constant 0 : i32
    %c16_i32 = arith.constant 16 : i32
    %1 = arith.muli %c0_i32, %c16_i32 : i32
    %2 = tpu.assume_multiple %1, 16 : i32
    %3 = arith.index_cast %2 : i32 to index
    %c0 = arith.constant 0 : index
    %4 = vector.load %arg1[%3, %c0] : memref<16x128xf32, #tpu.memory_space<vmem>>, vector<16x128xf32>
    %5 = arith.index_cast %2 : i32 to index
    %c0_0 = arith.constant 0 : index
    %6 = vector.load %arg2[%5, %c0_0] : memref<16x128xi32, #tpu.memory_space<vmem>>, vector<16x128xi32>
    %7 = arith.sitofp %6 : vector<16x128xi32> to vector<16x128xf32>
    %8 = math.absf %4 : vector<16x128xf32>
    %cst_1 = arith.constant 0.000000e+00 : f32
    %9 = vector.broadcast %cst_1 : f32 to vector<16x128xf32>
    %10 = arith.subf %9, %8 : vector<16x128xf32>
    %11 = math.exp %10 : vector<16x128xf32>
    %cst_2 = arith.constant 0.000000e+00 : f32
    %12 = vector.broadcast %cst_2 : f32 to vector<16x128xf32>
    %13 = arith.maximumf %4, %12 : vector<16x128xf32>
    %14 = arith.mulf %4, %7 : vector<16x128xf32>
    %15 = arith.subf %13, %14 : vector<16x128xf32>
    %16 = math.log1p %11 : vector<16x128xf32>
    %17 = arith.addf %15, %16 : vector<16x128xf32>
    %cst_3 = arith.constant 5.000000e-01 : f32
    %18 = vector.broadcast %cst_3 : f32 to vector<16x128xf32>
    %19 = arith.mulf %7, %18 : vector<16x128xf32>
    %cst_4 = arith.constant 2.500000e-01 : f32
    %20 = vector.broadcast %cst_4 : f32 to vector<16x128xf32>
    %21 = arith.addf %20, %19 : vector<16x128xf32>
    %cst_5 = arith.constant 0.000000e+00 : f32
    %22 = vector.broadcast %cst_5 : f32 to vector<16x128xf32>
    %23 = arith.cmpf ogt, %4, %22 : vector<16x128xf32>
    %cst_6 = arith.constant 5.000000e-01 : f32
    %24 = vector.broadcast %cst_6 : f32 to vector<16x128xf32>
    %25 = arith.cmpf ogt, %7, %24 : vector<16x128xf32>
    %26 = arith.xori %23, %25 : vector<16x128xi1>
    %cst_7 = arith.constant dense<true> : vector<16x128xi1>
    %27 = arith.xori %26, %cst_7 : vector<16x128xi1>
    %cst_8 = arith.constant 1.000000e+00 : f32
    %28 = vector.broadcast %cst_8 : f32 to vector<16x128xf32>
    %29 = arith.select %27, %11, %28 : vector<16x128xi1>, vector<16x128xf32>
    %cst_9 = arith.constant 1.000000e+00 : f32
    %30 = vector.broadcast %cst_9 : f32 to vector<16x128xf32>
    %31 = arith.addf %30, %11 : vector<16x128xf32>
    %32 = tpu.reciprocal %31 : vector<16x128xf32> -> vector<16x128xf32>
    %33 = arith.mulf %29, %32 : vector<16x128xf32>
    %34 = arith.mulf %33, %33 : vector<16x128xf32>
    %35 = arith.mulf %21, %34 : vector<16x128xf32>
    %36 = arith.mulf %35, %17 : vector<16x128xf32>
    %37 = vector.shape_cast %36 : vector<16x128xf32> to vector<2x8x128xf32>
    %cst_10 = arith.constant dense<0.000000e+00> : vector<8x128xf32>
    %38 = vector.multi_reduction <add>, %37, %cst_10 [0] : vector<2x8x128xf32> to vector<8x128xf32>
    %39 = arith.addf %0, %38 : vector<8x128xf32>
    %c1_i32 = arith.constant 1 : i32
    %40 = vector.shape_cast %39 : vector<8x128xf32> to vector<1x8x128xf32>
    %c0_11 = arith.constant 0 : index
    %c0_12 = arith.constant 0 : index
    %c0_13 = arith.constant 0 : index
    %41 = vector.load %arg3[%c0_11, %c0_12, %c0_13] : memref<1x8x128xf32, #tpu.memory_space<vmem>>, vector<1x8x128xf32>
    tpu.vector_store %arg3[%c0_11, %c0_12, %c0_13], %40 {strides = array<i32>} : memref<1x8x128xf32, #tpu.memory_space<vmem>>, vector<1x8x128xf32>,
    return
  }
  func.func @transform_0(%arg0: i32) -> (i32, i32) {
    %c0_i32 = arith.constant 0 : i32
    %c0_i32_0 = arith.constant 0 : i32
    return %arg0, %c0_i32 : i32, i32
  }
  func.func @transform_1(%arg0: i32) -> (i32, i32) {
    %c0_i32 = arith.constant 0 : i32
    %c0_i32_0 = arith.constant 0 : i32
    return %arg0, %c0_i32 : i32, i32
  }
  func.func @transform_2(%arg0: i32) -> (i32, i32, i32) {
    %c0_i32 = arith.constant 0 : i32
    %c0_i32_0 = arith.constant 0 : i32
    %c0_i32_1 = arith.constant 0 : i32
    return %arg0, %c0_i32, %c0_i32_0 : i32, i32, i32
  }
}

</mosaic_0001>

<llo_original>
// kernel: tpu_custom_call.1
$region0: #{tpu_custom_call.1}
  #allocation0 [shape = 'u32[]', space=smem, size = 0x4, offset = 0x4, fixed_abs, tag = 'smem constant byte address 0x4 - core index']
  #allocation1 [shape = 'u32[72,128]{1,0:T(1,128)}', space=vmem, size = 0x9000, scoped, tag = 'internal scratch']
  %s0 = inlined_call_operand.hbm [shape: f32[16,128], index: 0, kind: input, shape index: {}]
  %s1 = inlined_call_operand.hbm [shape: s32[16,128], index: 1, kind: input, shape index: {}]
  %s2 = inlined_call_operand.hbm [shape: f32[1,8,128], index: 2, kind: output, shape index: {}]
  %s3 = sld [smem:[#allocation0]]
  $region26: #{tpu_custom_call.1} parent=0
    _
  %s5 = ssub.s32 1, %s3
  %s6 = scalar_select 0, %s5, %s3
  $region1: #{tpu_custom_call.1} parent=0
    #allocation2 [shape = 'u8[8192]{0}', space=vmem, size = 0x2000, scoped, tag = 'input window, operand 0, single buffered']
    #allocation3 [shape = 's32[1]{0}', space=sflag, size = 0x4, scoped, tag = 'scoped memory for tpu_custom_call.1']
    #allocation4 [shape = 's32[1]{0}', space=sflag, size = 0x4, scoped, tag = 'scoped memory for tpu_custom_call.1']
    #allocation5 [shape = 'u8[8192]{0}', space=vmem, size = 0x2000, scoped, tag = 'input window, operand 1, single buffered']
    #allocation6 [shape = 's32[1]{0}', space=sflag, size = 0x4, scoped, tag = 'scoped memory for tpu_custom_call.1']
    #allocation7 [shape = 'u8[4096]{0}', space=vmem, size = 0x1000, scoped, tag = 'output window, operand 0, single buffered']
    %7 = vsyncpa [#allocation3], 0
    %8 = vsyncpa [#allocation6], 0
    %9 = vsyncpa [#allocation4], 0
    // Predicated region
    $region2: #{tpu_custom_call.1} parent=1 // pred_check
      _
    $region3: #{tpu_custom_call.1} parent=1 // pred_check_branch
      %11 = sbr.rel (0) target = $region5
    $region4: #{tpu_custom_call.1} parent=1 // pred_region
      %13 = vsyncadd [#allocation3], 0
      %s14 = sshll.u32 %s0, 4
      %s15 = int_to_ptr.hbm [resolvable:$true] %s14
      %s16 = sshll.u32 [#allocation2], 4
      %s17 = int_to_ptr.vmem [resolvable:$true] %s16
      %22 = dma.hbm_to_vmem [thread:$0]  %s15, 256, %s17, [#allocation3], 128, 128, 8
    $region5: #{tpu_custom_call.1} parent=1 // pred_fallthru
      _
    // Predicated region
    $region6: #{tpu_custom_call.1} parent=1 // pred_check
      _
    $region7: #{tpu_custom_call.1} parent=1 // pred_check_branch
      %24 = sbr.rel (0) target = $region9
    $region8: #{tpu_custom_call.1} parent=1 // pred_region
      %26 = vsyncadd [#allocation6], 0
      %s27 = sshll.u32 %s1, 4
      %s28 = int_to_ptr.hbm [resolvable:$true] %s27
      %s29 = sshll.u32 [#allocation5], 4
      %s30 = int_to_ptr.vmem [resolvable:$true] %s29
      %35 = dma.hbm_to_vmem [thread:$0]  %s28, 256, %s30, [#allocation6], 128, 128, 8
    $region9: #{tpu_custom_call.1} parent=1 // pred_fallthru
      _
    // Predicated region
    $region10: #{tpu_custom_call.1} parent=1 // pred_check
      _
    $region11: #{tpu_custom_call.1} parent=1 // pred_check_branch
      %37 = sbr.rel (0) target = $region13
    $region12: #{tpu_custom_call.1} parent=1 // pred_region
      %39 = dma.done [#allocation3], 256
    $region13: #{tpu_custom_call.1} parent=1 // pred_fallthru
      _
    // Predicated region
    $region14: #{tpu_custom_call.1} parent=1 // pred_check
      _
    $region15: #{tpu_custom_call.1} parent=1 // pred_check_branch
      %41 = sbr.rel (0) target = $region17
    $region16: #{tpu_custom_call.1} parent=1 // pred_region
      %43 = dma.done [#allocation6], 256
    $region17: #{tpu_custom_call.1} parent=1 // pred_fallthru
      _
    %v44 = vld [vmem:[#allocation2] sm:$0xff]
    %v45 = vld [vmem:[#allocation2 + $0x8] sm:$0xff]
    %v46 = vld [vmem:[#allocation5] sm:$0xff]
    %v47 = vld [vmem:[#allocation5 + $0x8] sm:$0xff]
    %v48 = vcvt.s32.f32 %v46
    %v49 = vcvt.s32.f32 %v47
    %v50 = vand.u32 2147483647, %v44
    %v51 = vand.u32 2147483647, %v45
    %v52 = vsub.f32 0.0, %v50
    %v53 = vsub.f32 0.0, %v51
    %v54 = vmul.f32 %v52, 1.442695
    %v55 = vpow.pop %v54
    %v56 = vmul.f32 %v53, 1.442695
    %v57 = vpow.pop %v56
    %v58 = vmax.f32 %v44, 0.0
    %v59 = vmax.f32 %v45, 0.0
    %v60 = vmul.f32 %v44, %v48
    %v61 = vmul.f32 %v45, %v49
    %v62 = vsub.f32 %v58, %v60
    %v63 = vsub.f32 %v59, %v61
    %v64 = vadd.f32 %v55, 1.0
    %v65 = vlog2.pop %v64
    %v66 = vmul.f32 %v65, 0.6931472
    %v67 = vmul.f32 -0.5, %v55
    %v68 = vadd.f32 %v67, 1.0
    %v69 = vmul.f32 %v68, %v55
    %v70 = vand.u32 2147483647, %v55
    %vm71 = vcmp.lt.f32.partialorder %v70, 0.0004427343
    %v72 = vsel %vm71, %v69, %v66
    %v73 = vadd.f32 %v57, 1.0
    %v74 = vlog2.pop %v73
    %v75 = vmul.f32 %v74, 0.6931472
    %v76 = vmul.f32 -0.5, %v57
    %v77 = vadd.f32 %v76, 1.0
    %v78 = vmul.f32 %v77, %v57
    %v79 = vand.u32 2147483647, %v57
    %vm80 = vcmp.lt.f32.partialorder %v79, 0.0004427343
    %v81 = vsel %vm80, %v78, %v75
    %v82 = vadd.f32 %v62, %v72
    %v83 = vadd.f32 %v63, %v81
    %v84 = vmul.f32 %v48, 0.5
    %v85 = vmul.f32 %v49, 0.5
    %v86 = vadd.f32 %v84, 0.25
    %v87 = vadd.f32 %v85, 0.25
    %vm88 = vcmp.gt.f32.partialorder %v44, 0.0
    %vm89 = vcmp.gt.f32.partialorder %v45, 0.0
    %vm90 = vcmp.gt.f32.partialorder %v48, 0.5
    %vm91 = vcmp.gt.f32.partialorder %v49, 0.5
    %vm92 = vmxor %vm88, %vm90
    %vm93 = vmxor %vm89, %vm91
    %vm94 = vmxor %vm92, 1
    %vm95 = vmxor %vm93, 1
    %v96 = vsel %vm94, %v55, 1.0
    %v97 = vsel %vm95, %v57, 1.0
    %v98 = vadd.f32 %v55, 1.0
    %v99 = vadd.f32 %v57, 1.0
    %v100 = vrcp.pop %v98
    %v101 = vmul.f32 %v98, %v100
    %v102 = vsub.f32 1.0, %v101
    %v103 = vmul.f32 %v100, %v102
    %v104 = vadd.f32 %v100, %v103
    %vm105 = vweird.f32 %v98
    %vm106 = vweird.f32 %v100
    %vm107 = vmor %vm105, %vm106
    %v108 = vsel %vm107, %v100, %v104
    %v109 = vand.u32 2147483647, %v98
    %vm110 = vcmp.eq.f32.partialorder %v109, 8.507059e+37
    %v111 = vand.u32 %v98, 2147483648
    %v112 = vor.u32 1.1754944e-38, %v111
    %v113 = vsel %vm110, %v112, %v108
    %v114 = vrcp.pop %v99
    %v115 = vmul.f32 %v99, %v114
    %v116 = vsub.f32 1.0, %v115
    %v117 = vmul.f32 %v114, %v116
    %v118 = vadd.f32 %v114, %v117
    %vm119 = vweird.f32 %v99
    %vm120 = vweird.f32 %v114
    %vm121 = vmor %vm119, %vm120
    %v122 = vsel %vm121, %v114, %v118
    %v123 = vand.u32 2147483647, %v99
    %vm124 = vcmp.eq.f32.partialorder %v123, 8.507059e+37
    %v125 = vand.u32 %v99, 2147483648
    %v126 = vor.u32 1.1754944e-38, %v125
    %v127 = vsel %vm124, %v126, %v122
    %v128 = vmul.f32 %v96, %v113
    %v129 = vmul.f32 %v97, %v127
    %v130 = vmul.f32 %v128, %v128
    %v131 = vmul.f32 %v129, %v129
    %v132 = vmul.f32 %v86, %v130
    %v133 = vmul.f32 %v87, %v131
    %v134 = vmul.f32 %v132, %v82
    %v135 = vmul.f32 %v133, %v83
    %v136 = vadd.f32 %v134, %v135
    %v137 = vadd.f32 %v136, 0.0
    %138 = vst [vmem:[#allocation7] sm:$0xff] %v137
    // Predicated region
    $region18: #{tpu_custom_call.1} parent=1 // pred_check
      _
    $region19: #{tpu_custom_call.1} parent=1 // pred_check_branch
      %140 = sbr.rel (0) target = $region21
    $region20: #{tpu_custom_call.1} parent=1 // pred_region
      %142 = vsyncadd [#allocation4], 0
      %s144 = sshll.u32 [#allocation7], 4
      %s145 = int_to_ptr.vmem [resolvable:$true] %s144
      %s146 = sshll.u32 %s2, 4
      %s147 = int_to_ptr.hbm [resolvable:$true] %s146
      %149 = dma.vmem_to_hbm [thread:$0]  %s145, 128, %s147, [#allocation4]
    $region21: #{tpu_custom_call.1} parent=1 // pred_fallthru
      _
    // Predicated region
    $region22: #{tpu_custom_call.1} parent=1 // pred_check
      _
    $region23: #{tpu_custom_call.1} parent=1 // pred_check_branch
      %151 = sbr.rel (0) target = $region25
    $region24: #{tpu_custom_call.1} parent=1 // pred_region
      %153 = dma.done [#allocation4], 128
    $region25: #{tpu_custom_call.1} parent=1 // pred_fallthru
      _
    %154 = vsyncpa [#allocation3], 1
    %155 = vsyncpa [#allocation6], 1
    %156 = vsyncpa [#allocation4], 1

</llo_original>
